<compile_context>
chip_gen: v7x
topology: tpu7x:2x2x1
jax: 0.10.0
libtpu: 0.0.40
codegen_flags: <defaults>
</compile_context>

<pallas_src>
import numpy as np
from functools import partial

import jax
import jax.numpy as jnp
from jax.experimental import pallas as pl
from jax.experimental.pallas import tpu as pltpu


# ---------------------------------------------------------------------------
# Fused kernel: BN1 -> ReLU -> Conv1x1(+BN2 scale) -> +BN2 shift -> ReLU
#               -> Conv3x3 (valid), one image per grid step, channel-major.
# ---------------------------------------------------------------------------
def _dense_layer_kernel(x_ref, s1_ref, t1_ref, w1_ref, t2_ref, w2_ref,
                        o_ref, a2_ref, *, W):
    # x_ref : (1, Cin, HW)      one image, channel-major, spatial flat in lanes
    # s1/t1 : (Cin, 1)          folded BatchNorm1 scale / shift (f32)
    # w1_ref: (Cmid, Cin)       1x1 conv weight with BN2 scale folded in (bf16)
    # t2_ref: (Cmid, 1)         folded BatchNorm2 shift (f32 bias)
    # w2_ref: (3, Cout, 3*Cmid) 3x3 conv weight, layout [dj, c, di*Cmid + m] (bf16)
    # o_ref : (1, Cout, Ho*W)   W-wide flattened output rows (cols >= Wo are junk)
    # a2_ref: (Cmid, HW + W)    VMEM scratch for the bottleneck activation (bf16)
    HW = x_ref.shape[2]
    n_out = o_ref.shape[2]                  # Ho * W
    Cmid, HWp = a2_ref.shape

    # ---- Stage 1: BN1 -> ReLU -> 1x1 conv, fused with BN2 shift + ReLU ------
    # (Cmid, Cin) @ (Cin, HW): the spatial dim is the MXU column dim -> all
    # elementwise work and the matmul output are lane-dense.
    a1 = jnp.maximum(x_ref[0] * s1_ref[...] + t1_ref[...], 0.0)
    mid = jnp.dot(w1_ref[...], a1.astype(jnp.bfloat16),
                  preferred_element_type=jnp.float32)
    a2_ref[:, :HW] = jnp.maximum(mid + t2_ref[...], 0.0).astype(jnp.bfloat16)
    # Zero the halo tail every step: the scratch persists across grid steps and
    # the "parallel" axis may be split across cores, so no program_id gating.
    # The tail only ever feeds junk output columns (>= Wo), but it must not be
    # uninitialized VMEM.
    a2_ref[:, HW:] = jnp.zeros((Cmid, HWp - HW), jnp.bfloat16)

    # ---- Stage 2: 3x3 "valid" conv ------------------------------------------
    # Tap (di, dj) is a flat lane offset di*W + dj into a2.  The three di taps
    # of each column shift dj are stacked along K, so the MXU sees 3 matmuls of
    # (Cout, 3*Cmid) @ (3*Cmid, Ho*W) with a lane-dense N dimension.
    # Reads past column HW-1 (and wrapped columns) only feed output columns
    # >= Wo, which the wrapper / consumer crops.
    acc = None
    for dj in range(3):
        rhs = jnp.concatenate(
            [a2_ref[:, pl.ds(di * W + dj, n_out)] for di in range(3)], axis=0)
        part = jnp.dot(w2_ref[dj], rhs, preferred_element_type=jnp.float32)
        acc = part if acc is None else acc + part
    o_ref[0] = acc                          # (Cout, Ho*W): single lane-dense store


def dense_layer_fused(x_flat, s1, t1, w1k, t2, w2k, *, W):
    """x_flat: (N, Cin, H*W) f32, channel-major.

    Returns (N, Cout, Ho*W) f32 where each output row still has W (not Wo)
    columns; columns >= W-2 are junk and must be cropped (or skipped by the
    consumer's index_map)."""
    N, Cin, HW = x_flat.shape
    H = HW // W
    assert H * W == HW and H >= 3 and W >= 3, "3x3 valid conv needs H,W >= 3"
    Ho = H - 2
    Cmid = w1k.shape[0]
    Cout = w2k.shape[1]
    HWp = HW + W   # 2-column halo (rounded up to one image row) for the taps

    kernel = partial(_dense_layer_kernel, W=W)
    return pl.pallas_call(
        kernel,
        out_shape=jax.ShapeDtypeStruct((N, Cout, Ho * W), jnp.float32),
        grid_spec=pltpu.PrefetchScalarGridSpec(
            num_scalar_prefetch=0,
            grid=(N,),
            in_specs=[
                pl.BlockSpec((1, Cin, HW), lambda n: (n, 0, 0)),
                pl.BlockSpec((Cin, 1), lambda n: (0, 0)),
                pl.BlockSpec((Cin, 1), lambda n: (0, 0)),
                pl.BlockSpec((Cmid, Cin), lambda n: (0, 0)),
                pl.BlockSpec((Cmid, 1), lambda n: (0, 0)),
                pl.BlockSpec((3, Cout, 3 * Cmid), lambda n: (0, 0, 0)),
            ],
            out_specs=pl.BlockSpec((1, Cout, Ho * W), lambda n: (n, 0, 0)),
            scratch_shapes=[pltpu.VMEM((Cmid, HWp), jnp.bfloat16)],
        ),
        compiler_params=pltpu.CompilerParams(
            dimension_semantics=("parallel",),
            vmem_limit_bytes=32 * 1024 * 1024),
    )(x_flat, s1, t1, w1k, t2, w2k)


# ---------------------------------------------------------------------------
# DenseLayer wrapper (parameter setup + layout glue in plain JAX)
# ---------------------------------------------------------------------------
class DenseLayerPallas:
    def __init__(self, input_features, output_features, bn_size, drop_rate,
                 key, eps=1e-5):
        self.drop_rate = drop_rate
        self.eps = eps
        cmid = output_features * bn_size
        self.cin, self.cmid, self.cout = input_features, cmid, output_features
        ks = jax.random.split(key, 10)
        f32 = jnp.float32
        # BN1 over Cin channels (running stats; eval mode)
        self.g1 = jax.random.uniform(ks[0], (input_features,), f32, 0.5, 1.5)
        self.b1 = 0.1 * jax.random.normal(ks[1], (input_features,), f32)
        self.m1 = 0.1 * jax.random.normal(ks[2], (input_features,), f32)
        self.v1 = jax.random.uniform(ks[3], (input_features,), f32, 0.5, 1.5)
        # conv1 weight, PyTorch layout (Cmid, Cin, 1, 1) stored as (Cmid, Cin)
        self.w1 = jax.random.normal(ks[4], (cmid, input_features), f32) \
            / np.sqrt(input_features)
        # BN2 over Cmid channels
        self.g2 = jax.random.uniform(ks[5], (cmid,), f32, 0.5, 1.5)
        self.b2 = 0.1 * jax.random.normal(ks[6], (cmid,), f32)
        self.m2 = 0.1 * jax.random.normal(ks[7], (cmid,), f32)
        self.v2 = jax.random.uniform(ks[8], (cmid,), f32, 0.5, 1.5)
        # conv2 weight, PyTorch layout (Cout, Cmid, 3, 3)
        self.w2 = jax.random.normal(ks[9], (output_features, cmid, 3, 3), f32) \
            / np.sqrt(9 * cmid)

    def _fold_bn(self, g, b, m, v):
        s = g / jnp.sqrt(v + self.eps)
        return s, b - m * s

    def _kernel_params(self):
        s1, t1 = self._fold_bn(self.g1, self.b1, self.m1, self.v1)
        s2, t2 = self._fold_bn(self.g2, self.b2, self.m2, self.v2)
        # Fold BN2's per-channel scale into the 1x1 weight; keep its shift.
        w1k = (s2[:, None] * self.w1).astype(jnp.bfloat16)            # (Cmid, Cin)
        # 3x3 weight (c, m, di, dj) -> (dj, c, di*Cmid + m) for the tap-merged
        # K = 3*Cmid matmuls.
        w2k = jnp.transpose(self.w2, (3, 0, 2, 1)).reshape(
            3, self.cout, 3 * self.cmid).astype(jnp.bfloat16)
        return (s1.reshape(-1, 1), t1.reshape(-1, 1), w1k,
                t2.reshape(-1, 1), w2k)

    def forward_rows(self, x):
        """NCHW tensor or list of NCHW tensors -> (N, Cout, Ho*W) W-wide rows.

        Chained consumers (the next DenseLayer in a dense block) can consume
        this layout directly and skip the crop copy entirely."""
        xs = x if isinstance(x, (list, tuple)) else [x]
        x_nchw = xs[0] if len(xs) == 1 else jnp.concatenate(xs, axis=1)
        x_nchw = x_nchw.astype(jnp.float32)
        N, Cin, H, W = x_nchw.shape
        s1, t1, w1k, t2, w2k = self._kernel_params()
        out = dense_layer_fused(x_nchw.reshape(N, Cin, H * W),
                                s1, t1, w1k, t2, w2k, W=W)
        # TODO(synk): training-mode dropout (RNG mask + 1/(1-p) scale) and
        # training-mode BatchNorm batch statistics are not implemented; this is
        # the eval-mode forward pass (dropout == identity).
        return out, (H, W)

    def __call__(self, x):
        out, (H, W) = self.forward_rows(x)
        N = out.shape[0]
        Ho, Wo = H - 2, W - 2
        # Kernel output is already channel-major (NCHW), so no transpose is
        # needed -- only this one small crop of the junk columns remains.
        return out.reshape(N, self.cout, Ho, W)[:, :, :, :Wo]

    # Pure-JAX reference (same folded-BN eval semantics) for verification.
    def reference(self, x_nchw):
        hp = jax.lax.Precision.HIGHEST
        x = x_nchw.astype(jnp.float32)
        s1, t1 = self._fold_bn(self.g1, self.b1, self.m1, self.v1)
        a1 = jnp.maximum(x * s1[None, :, None, None]
                         + t1[None, :, None, None], 0.0)
        mid = jnp.einsum('nchw,dc->ndhw', a1, self.w1, precision=hp)
        s2, t2 = self._fold_bn(self.g2, self.b2, self.m2, self.v2)
        a2 = jnp.maximum(mid * s2[None, :, None, None]
                         + t2[None, :, None, None], 0.0)
        N, _, H, W = a2.shape
        Ho, Wo = H - 2, W - 2
        out = jnp.zeros((N, self.cout, Ho, Wo), jnp.float32)
        for di in range(3):
            for dj in range(3):
                out = out + jnp.einsum('nmhw,om->nohw',
                                       a2[:, :, di:di + Ho, dj:dj + Wo],
                                       self.w2[:, :, di, dj], precision=hp)
        return out


if __name__ == "__main__":
    key = jax.random.PRNGKey(0)
    k_x, k_p = jax.random.split(key)

    N, Cin, H, W = 2, 4, 16, 16          # input x: NCHW
    growth_k, bn_size, drop_rate = 8, 4, 0.0

    x = jax.random.normal(k_x, (N, Cin, H, W), jnp.float32)
    layer = DenseLayerPallas(Cin, growth_k, bn_size, drop_rate, k_p)

    out = layer(x)
    out = jax.block_until_ready(out)

    assert out.shape == (N, growth_k, H - 2, W - 2), out.shape

    ref = jax.block_until_ready(layer.reference(x))
    np.testing.assert_allclose(np.asarray(out), np.asarray(ref),
                               rtol=1e-2, atol=1e-2)
    print("KERNEL_OK")
</pallas_src>

<mosaic_0001>
module attributes {stable_mosaic.version = 11 : i64} {
  func.func @_dense_layer_kernel(%arg0: i32, %arg1: memref<1x4x256xf32, #tpu.memory_space<vmem>>, %arg2: memref<4x1xf32, #tpu.memory_space<vmem>>, %arg3: memref<4x1xf32, #tpu.memory_space<vmem>>, %arg4: memref<32x4xbf16, #tpu.memory_space<vmem>>, %arg5: memref<32x1xf32, #tpu.memory_space<vmem>>, %arg6: memref<3x8x96xbf16, #tpu.memory_space<vmem>>, %arg7: memref<1x8x224xf32, #tpu.memory_space<vmem>>, %arg8: memref<32x272xbf16, #tpu.memory_space<vmem>>) attributes {dimension_semantics = [#tpu.dimension_semantics<parallel>], iteration_bounds = array<i64: 2>, scalar_prefetch = 0 : i64, scratch_operands = 1 : i64, tpu.core_type = #tpu.core_type<tc>, window_params = [{transform_indices = @transform_0, window_bounds = array<i64: 1, 4, 256>}, {pipeline_mode = #tpu.pipeline_mode<synchronous>, transform_indices = @transform_1, window_bounds = array<i64: 4, 1>}, {pipeline_mode = #tpu.pipeline_mode<synchronous>, transform_indices = @transform_2, window_bounds = array<i64: 4, 1>}, {pipeline_mode = #tpu.pipeline_mode<synchronous>, transform_indices = @transform_3, window_bounds = array<i64: 32, 4>}, {pipeline_mode = #tpu.pipeline_mode<synchronous>, transform_indices = @transform_4, window_bounds = array<i64: 32, 1>}, {pipeline_mode = #tpu.pipeline_mode<synchronous>, transform_indices = @transform_5, window_bounds = array<i64: 3, 8, 96>}, {transform_indices = @transform_6, window_bounds = array<i64: 1, 8, 224>}]} {
    %c0 = arith.constant 0 : index
    %c0_0 = arith.constant 0 : index
    %c0_1 = arith.constant 0 : index
    %0 = vector.load %arg1[%c0, %c0_0, %c0_1] : memref<1x4x256xf32, #tpu.memory_space<vmem>>, vector<1x4x256xf32>
    %1 = vector.shape_cast %0 : vector<1x4x256xf32> to vector<4x256xf32>
    %c0_2 = arith.constant 0 : index
    %c0_3 = arith.constant 0 : index
    %2 = vector.load %arg2[%c0_2, %c0_3] : memref<4x1xf32, #tpu.memory_space<vmem>>, vector<4x1xf32>
    %3 = vector.broadcast %2 : vector<4x1xf32> to vector<4x256xf32>
    %4 = arith.mulf %1, %3 : vector<4x256xf32>
    %c0_4 = arith.constant 0 : index
    %c0_5 = arith.constant 0 : index
    %5 = vector.load %arg3[%c0_4, %c0_5] : memref<4x1xf32, #tpu.memory_space<vmem>>, vector<4x1xf32>
    %6 = vector.broadcast %5 : vector<4x1xf32> to vector<4x256xf32>
    %7 = arith.addf %4, %6 : vector<4x256xf32>
    %cst = arith.constant 0.000000e+00 : f32
    %8 = vector.broadcast %cst : f32 to vector<4x256xf32>
    %9 = arith.maximumf %7, %8 : vector<4x256xf32>
    %c0_6 = arith.constant 0 : index
    %c0_7 = arith.constant 0 : index
    %10 = vector.load %arg4[%c0_6, %c0_7] : memref<32x4xbf16, #tpu.memory_space<vmem>>, vector<32x4xbf16>
    %11 = arith.truncf %9 : vector<4x256xf32> to vector<4x256xbf16>
    %cst_8 = arith.constant dense<0.000000e+00> : vector<32x256xf32>
    %12 = tpu.matmul %10, %11, %cst_8 {dimension_numbers = #tpu.dot_dimension_numbers<[1], [0], [0], [1], [0, 0, 1, 1], [], []>} : vector<32x4xbf16>, vector<4x256xbf16>, vector<32x256xf32> -> vector<32x256xf32>
    %c0_9 = arith.constant 0 : index
    %c0_10 = arith.constant 0 : index
    %13 = vector.load %arg5[%c0_9, %c0_10] : memref<32x1xf32, #tpu.memory_space<vmem>>, vector<32x1xf32>
    %14 = vector.broadcast %13 : vector<32x1xf32> to vector<32x256xf32>
    %15 = arith.addf %12, %14 : vector<32x256xf32>
    %cst_11 = arith.constant 0.000000e+00 : f32
    %16 = vector.broadcast %cst_11 : f32 to vector<32x256xf32>
    %17 = arith.maximumf %15, %16 : vector<32x256xf32>
    %18 = arith.truncf %17 : vector<32x256xf32> to vector<32x256xbf16>
    %c0_12 = arith.constant 0 : index
    %c0_13 = arith.constant 0 : index
    %19 = vector.load %arg8[%c0_12, %c0_13] : memref<32x272xbf16, #tpu.memory_space<vmem>>, vector<32x256xbf16>
    tpu.vector_store %arg8[%c0_12, %c0_13], %18 {strides = array<i32>} : memref<32x272xbf16, #tpu.memory_space<vmem>>, vector<32x256xbf16>,
    %cst_14 = arith.constant 0.000000e+00 : bf16
    %20 = vector.broadcast %cst_14 : bf16 to vector<32x16xbf16>
    %c0_15 = arith.constant 0 : index
    %c256 = arith.constant 256 : index
    %21 = vector.load %arg8[%c0_15, %c256] : memref<32x272xbf16, #tpu.memory_space<vmem>>, vector<32x16xbf16>
    tpu.vector_store %arg8[%c0_15, %c256], %20 {strides = array<i32>} : memref<32x272xbf16, #tpu.memory_space<vmem>>, vector<32x16xbf16>,
    %c0_16 = arith.constant 0 : index
    %c0_17 = arith.constant 0 : index
    %22 = vector.load %arg8[%c0_16, %c0_17] : memref<32x272xbf16, #tpu.memory_space<vmem>>, vector<32x224xbf16>
    %c0_18 = arith.constant 0 : index
    %c16 = arith.constant 16 : index
    %23 = vector.load %arg8[%c0_18, %c16] : memref<32x272xbf16, #tpu.memory_space<vmem>>, vector<32x224xbf16>
    %c0_19 = arith.constant 0 : index
    %c32 = arith.constant 32 : index
    %24 = vector.load %arg8[%c0_19, %c32] : memref<32x272xbf16, #tpu.memory_space<vmem>>, vector<32x224xbf16>
    %25 = tpu.concatenate %22, %23, %24 in 0 : vector<32x224xbf16>, vector<32x224xbf16>, vector<32x224xbf16> -> vector<96x224xbf16>
    %c0_20 = arith.constant 0 : index
    %c0_21 = arith.constant 0 : index
    %c0_22 = arith.constant 0 : index
    %26 = vector.load %arg6[%c0_20, %c0_21, %c0_22] : memref<3x8x96xbf16, #tpu.memory_space<vmem>>, vector<1x8x96xbf16>
    %27 = vector.shape_cast %26 : vector<1x8x96xbf16> to vector<8x96xbf16>
    %cst_23 = arith.constant dense<0.000000e+00> : vector<8x224xf32>
    %28 = tpu.matmul %27, %25, %cst_23 {dimension_numbers = #tpu.dot_dimension_numbers<[1], [0], [0], [1], [0, 0, 1, 1], [], []>} : vector<8x96xbf16>, vector<96x224xbf16>, vector<8x224xf32> -> vector<8x224xf32>
    %c0_24 = arith.constant 0 : index
    %c1 = arith.constant 1 : index
    %29 = vector.load %arg8[%c0_24, %c1] : memref<32x272xbf16, #tpu.memory_space<vmem>>, vector<32x224xbf16>
    %c0_25 = arith.constant 0 : index
    %c17 = arith.constant 17 : index
    %30 = vector.load %arg8[%c0_25, %c17] : memref<32x272xbf16, #tpu.memory_space<vmem>>, vector<32x224xbf16>
    %c0_26 = arith.constant 0 : index
    %c33 = arith.constant 33 : index
    %31 = vector.load %arg8[%c0_26, %c33] : memref<32x272xbf16, #tpu.memory_space<vmem>>, vector<32x224xbf16>
    %32 = tpu.concatenate %29, %30, %31 in 0 : vector<32x224xbf16>, vector<32x224xbf16>, vector<32x224xbf16> -> vector<96x224xbf16>
    %c1_27 = arith.constant 1 : index
    %c0_28 = arith.constant 0 : index
    %c0_29 = arith.constant 0 : index
    %33 = vector.load %arg6[%c1_27, %c0_28, %c0_29] : memref<3x8x96xbf16, #tpu.memory_space<vmem>>, vector<1x8x96xbf16>
    %34 = vector.shape_cast %33 : vector<1x8x96xbf16> to vector<8x96xbf16>
    %cst_30 = arith.constant dense<0.000000e+00> : vector<8x224xf32>
    %35 = tpu.matmul %34, %32, %cst_30 {dimension_numbers = #tpu.dot_dimension_numbers<[1], [0], [0], [1], [0, 0, 1, 1], [], []>} : vector<8x96xbf16>, vector<96x224xbf16>, vector<8x224xf32> -> vector<8x224xf32>
    %36 = arith.addf %28, %35 : vector<8x224xf32>
    %c0_31 = arith.constant 0 : index
    %c2 = arith.constant 2 : index
    %37 = vector.load %arg8[%c0_31, %c2] : memref<32x272xbf16, #tpu.memory_space<vmem>>, vector<32x224xbf16>
    %c0_32 = arith.constant 0 : index
    %c18 = arith.constant 18 : index
    %38 = vector.load %arg8[%c0_32, %c18] : memref<32x272xbf16, #tpu.memory_space<vmem>>, vector<32x224xbf16>
    %c0_33 = arith.constant 0 : index
    %c34 = arith.constant 34 : index
    %39 = vector.load %arg8[%c0_33, %c34] : memref<32x272xbf16, #tpu.memory_space<vmem>>, vector<32x224xbf16>
    %40 = tpu.concatenate %37, %38, %39 in 0 : vector<32x224xbf16>, vector<32x224xbf16>, vector<32x224xbf16> -> vector<96x224xbf16>
    %c2_34 = arith.constant 2 : index
    %c0_35 = arith.constant 0 : index
    %c0_36 = arith.constant 0 : index
    %41 = vector.load %arg6[%c2_34, %c0_35, %c0_36] : memref<3x8x96xbf16, #tpu.memory_space<vmem>>, vector<1x8x96xbf16>
    %42 = vector.shape_cast %41 : vector<1x8x96xbf16> to vector<8x96xbf16>
    %cst_37 = arith.constant dense<0.000000e+00> : vector<8x224xf32>
    %43 = tpu.matmul %42, %40, %cst_37 {dimension_numbers = #tpu.dot_dimension_numbers<[1], [0], [0], [1], [0, 0, 1, 1], [], []>} : vector<8x96xbf16>, vector<96x224xbf16>, vector<8x224xf32> -> vector<8x224xf32>
    %44 = arith.addf %36, %43 : vector<8x224xf32>
    %c0_38 = arith.constant 0 : index
    %c0_39 = arith.constant 0 : index
    %c0_40 = arith.constant 0 : index
    %45 = vector.load %arg7[%c0_38, %c0_39, %c0_40] : memref<1x8x224xf32, #tpu.memory_space<vmem>>, vector<1x8x224xf32>
    %46 = vector.shape_cast %45 : vector<1x8x224xf32> to vector<8x224xf32>
    %47 = vector.shape_cast %44 : vector<8x224xf32> to vector<1x8x224xf32>
    tpu.vector_store %arg7[%c0_38, %c0_39, %c0_40], %47 {strides = array<i32>} : memref<1x8x224xf32, #tpu.memory_space<vmem>>, vector<1x8x224xf32>,
    return
  }
  func.func @transform_0(%arg0: i32) -> (i32, i32, i32) {
    %c0_i32 = arith.constant 0 : i32
    %c0_i32_0 = arith.constant 0 : i32
    %c0_i32_1 = arith.constant 0 : i32
    return %arg0, %c0_i32, %c0_i32_0 : i32, i32, i32
  }
  func.func @transform_1(%arg0: i32) -> (i32, i32) {
    %c0_i32 = arith.constant 0 : i32
    %c0_i32_0 = arith.constant 0 : i32
    %c0_i32_1 = arith.constant 0 : i32
    return %c0_i32, %c0_i32_0 : i32, i32
  }
  func.func @transform_2(%arg0: i32) -> (i32, i32) {
    %c0_i32 = arith.constant 0 : i32
    %c0_i32_0 = arith.constant 0 : i32
    %c0_i32_1 = arith.constant 0 : i32
    return %c0_i32, %c0_i32_0 : i32, i32
  }
  func.func @transform_3(%arg0: i32) -> (i32, i32) {
    %c0_i32 = arith.constant 0 : i32
    %c0_i32_0 = arith.constant 0 : i32
    %c0_i32_1 = arith.constant 0 : i32
    return %c0_i32, %c0_i32_0 : i32, i32
  }
  func.func @transform_4(%arg0: i32) -> (i32, i32) {
    %c0_i32 = arith.constant 0 : i32
    %c0_i32_0 = arith.constant 0 : i32
    %c0_i32_1 = arith.constant 0 : i32
    return %c0_i32, %c0_i32_0 : i32, i32
  }
  func.func @transform_5(%arg0: i32) -> (i32, i32, i32) {
    %c0_i32 = arith.constant 0 : i32
    %c0_i32_0 = arith.constant 0 : i32
    %c0_i32_1 = arith.constant 0 : i32
    %c0_i32_2 = arith.constant 0 : i32
    return %c0_i32, %c0_i32_0, %c0_i32_1 : i32, i32, i32
  }
  func.func @transform_6(%arg0: i32) -> (i32, i32, i32) {
    %c0_i32 = arith.constant 0 : i32
    %c0_i32_0 = arith.constant 0 : i32
    %c0_i32_1 = arith.constant 0 : i32
    return %arg0, %c0_i32, %c0_i32_0 : i32, i32, i32
  }
}

</mosaic_0001>

<llo_original>
// kernel: tpu_custom_call.1
$region0: #{tpu_custom_call.1}
  #allocation0 [shape = 'u32[]', space=smem, size = 0x4, offset = 0x4, fixed_abs, tag = 'smem constant byte address 0x4 - core index']
  #allocation1 [shape = 'u32[144,128]{1,0:T(1,128)}', space=vmem, size = 0x12000, scoped, tag = 'internal scratch']
  #allocation2 [shape = 'bf16[32,272]{1,0:T(16,128)(2,1)}', space=vmem, size = 0x6000, scoped, tag = 'scratch operand']
  %s0 = inlined_call_operand.vmem [shape: f32[2,4,256], index: 0, kind: input, shape index: {}]
  %s1 = inlined_call_operand.vmem [shape: f32[4,1], index: 1, kind: input, shape index: {}]
  %s2 = inlined_call_operand.vmem [shape: f32[4,1], index: 2, kind: input, shape index: {}]
  %s3 = inlined_call_operand.vmem [shape: bf16[32,4], index: 3, kind: input, shape index: {}]
  %s4 = inlined_call_operand.vmem [shape: f32[32,1], index: 4, kind: input, shape index: {}]
  %s5 = inlined_call_operand.vmem [shape: bf16[3,8,96], index: 5, kind: input, shape index: {}]
  %s6 = inlined_call_operand.hbm [shape: f32[2,8,224], index: 6, kind: output, shape index: {}]
  %s7 = sld [smem:[#allocation0]]
  $region57: #{tpu_custom_call.1} parent=0
    _
  %s9 = ssub.s32 1, %s7
  %s10 = scalar_select 0, %s9, %s7
  $region1: #{tpu_custom_call.1} parent=0
    #allocation3 [shape = 'u8[16384]{0}', space=vmem, size = 0x4000, scoped, tag = 'output window, operand 0']
    #allocation4 [shape = 's32[2]{0}', space=sflag, size = 0x8, scoped, tag = 'scoped memory for tpu_custom_call.1']
    %11 = vsyncpa [#allocation4], 0
    %s12 = scalar_lea.sflag [#allocation4], 1
    %13 = vsyncpa %s12, 0
    loop: start=0, step=1, limit=4
    $region2: #{tpu_custom_call.1} parent=1 // loop_pre_header
      _
    $region3: #{tpu_custom_call.1} parent=1 // loop_header
      %s15 = sphi 0, %s19
      %p16 = scmp.ge.s32.totalorder %s15, 4
      %s25 = sphi 0, %s27
      %s28 = sphi 0, %s25
      %s29 = sphi 0, %s28
      %s45 = sphi 0, %s29
      %s49 = sphi 0, %s49
      %s51 = sphi 0, %s49
      %s52 = sphi 0, %s51
      %s66 = sphi 0, %s52
      %s70 = sphi 0, %s70
      %s72 = sphi 0, %s70
      %s73 = sphi 0, %s72
      %s87 = sphi 0, %s73
      %s91 = sphi 0, %s91
      %s93 = sphi 0, %s91
      %s94 = sphi 0, %s93
      %s108 = sphi 0, %s94
      %s112 = sphi 0, %s112
      %s114 = sphi 0, %s112
      %s115 = sphi 0, %s114
      %s129 = sphi 0, %s115
      %s133 = sphi 0, %s133
      %s135 = sphi 0, %s133
      %s136 = sphi 0, %s135
      %s150 = sphi 0, %s136
      %s156 = sphi 0, %s158
      %s159 = sphi 0, %s156
      %s160 = sphi 0, %s159
      %s176 = sphi 0, %s160
    $region4: #{tpu_custom_call.1} parent=1 // loop_header_branch
      %18 = sbr.rel (%p16) target = $region8
    $region5: #{tpu_custom_call.1} parent=1 // loop_body
      %s20 = ssub.s32 %s15, 1
      %s21 = ssub.s32 %s15, 2
      %s22 = sadd.s32 %s15, 1
      %s23 = ssub.s32 %s15, %s22
      %p24 = scmp.eq.s32.totalorder %s23, 0
      %s26 = sadd.s32 %s25, 1
      %s27 = scalar_select %p24, %s25, %s26
      %p30 = pneg %p24
      %p31 = scmp.eq.s32.totalorder %s15, 1
      %p32 = por %p30, %p31
      %p33 = scmp.ne.s32.totalorder %s25, %s28
      %p34 = scmp.eq.s32.totalorder %s15, 0
      %p35 = por %p33, %p34
      %p36 = scmp.ne.s32.totalorder %s25, %s28
      %p37 = scmp.eq.s32.totalorder %s20, 1
      %p38 = por %p36, %p37
      %p39 = scmp.ne.s32.totalorder %s28, %s29
      %p40 = scmp.eq.s32.totalorder %s20, 0
      %p41 = por %p39, %p40
      %p42 = scmp.ne.s32.totalorder %s28, %s29
      %p43 = scmp.eq.s32.totalorder %s21, 1
      %p44 = por %p42, %p43
      %p46 = scmp.ne.s32.totalorder %s29, %s45
      %p47 = scmp.eq.s32.totalorder %s21, 0
      %p48 = por %p46, %p47
      %s50 = sadd.s32 %s49, 1
      %p53 = scmp.eq.s32.totalorder %s15, 1
      %p54 = scmp.ne.s32.totalorder %s49, %s51
      %p55 = scmp.eq.s32.totalorder %s15, 0
      %p56 = por %p54, %p55
      %p57 = scmp.ne.s32.totalorder %s49, %s51
      %p58 = scmp.eq.s32.totalorder %s20, 1
      %p59 = por %p57, %p58
      %p60 = scmp.ne.s32.totalorder %s51, %s52
      %p61 = scmp.eq.s32.totalorder %s20, 0
      %p62 = por %p60, %p61
      %p63 = scmp.ne.s32.totalorder %s51, %s52
      %p64 = scmp.eq.s32.totalorder %s21, 1
      %p65 = por %p63, %p64
      %p67 = scmp.ne.s32.totalorder %s52, %s66
      %p68 = scmp.eq.s32.totalorder %s21, 0
      %p69 = por %p67, %p68
      %s71 = sadd.s32 %s70, 1
      %p74 = scmp.eq.s32.totalorder %s15, 1
      %p75 = scmp.ne.s32.totalorder %s70, %s72
      %p76 = scmp.eq.s32.totalorder %s15, 0
      %p77 = por %p75, %p76
      %p78 = scmp.ne.s32.totalorder %s70, %s72
      %p79 = scmp.eq.s32.totalorder %s20, 1
      %p80 = por %p78, %p79
      %p81 = scmp.ne.s32.totalorder %s72, %s73
      %p82 = scmp.eq.s32.totalorder %s20, 0
      %p83 = por %p81, %p82
      %p84 = scmp.ne.s32.totalorder %s72, %s73
      %p85 = scmp.eq.s32.totalorder %s21, 1
      %p86 = por %p84, %p85
      %p88 = scmp.ne.s32.totalorder %s73, %s87
      %p89 = scmp.eq.s32.totalorder %s21, 0
      %p90 = por %p88, %p89
      %s92 = sadd.s32 %s91, 1
      %p95 = scmp.eq.s32.totalorder %s15, 1
      %p96 = scmp.ne.s32.totalorder %s91, %s93
      %p97 = scmp.eq.s32.totalorder %s15, 0
      %p98 = por %p96, %p97
      %p99 = scmp.ne.s32.totalorder %s91, %s93
      %p100 = scmp.eq.s32.totalorder %s20, 1
      %p101 = por %p99, %p100
      %p102 = scmp.ne.s32.totalorder %s93, %s94
      %p103 = scmp.eq.s32.totalorder %s20, 0
      %p104 = por %p102, %p103
      %p105 = scmp.ne.s32.totalorder %s93, %s94
      %p106 = scmp.eq.s32.totalorder %s21, 1
      %p107 = por %p105, %p106
      %p109 = scmp.ne.s32.totalorder %s94, %s108
      %p110 = scmp.eq.s32.totalorder %s21, 0
      %p111 = por %p109, %p110
      %s113 = sadd.s32 %s112, 1
      %p116 = scmp.eq.s32.totalorder %s15, 1
      %p117 = scmp.ne.s32.totalorder %s112, %s114
      %p118 = scmp.eq.s32.totalorder %s15, 0
      %p119 = por %p117, %p118
      %p120 = scmp.ne.s32.totalorder %s112, %s114
      %p121 = scmp.eq.s32.totalorder %s20, 1
      %p122 = por %p120, %p121
      %p123 = scmp.ne.s32.totalorder %s114, %s115
      %p124 = scmp.eq.s32.totalorder %s20, 0
      %p125 = por %p123, %p124
      %p126 = scmp.ne.s32.totalorder %s114, %s115
      %p127 = scmp.eq.s32.totalorder %s21, 1
      %p128 = por %p126, %p127
      %p130 = scmp.ne.s32.totalorder %s115, %s129
      %p131 = scmp.eq.s32.totalorder %s21, 0
      %p132 = por %p130, %p131
      %s134 = sadd.s32 %s133, 1
      %p137 = scmp.eq.s32.totalorder %s15, 1
      %p138 = scmp.ne.s32.totalorder %s133, %s135
      %p139 = scmp.eq.s32.totalorder %s15, 0
      %p140 = por %p138, %p139
      %p141 = scmp.ne.s32.totalorder %s133, %s135
      %p142 = scmp.eq.s32.totalorder %s20, 1
      %p143 = por %p141, %p142
      %p144 = scmp.ne.s32.totalorder %s135, %s136
      %p145 = scmp.eq.s32.totalorder %s20, 0
      %p146 = por %p144, %p145
      %p147 = scmp.ne.s32.totalorder %s135, %s136
      %p148 = scmp.eq.s32.totalorder %s21, 1
      %p149 = por %p147, %p148
      %p151 = scmp.ne.s32.totalorder %s136, %s150
      %p152 = scmp.eq.s32.totalorder %s21, 0
      %p153 = por %p151, %p152
      %s154 = ssub.s32 %s15, %s22
      %p155 = scmp.eq.s32.totalorder %s154, 0
      %s157 = sadd.s32 %s156, 1
      %s158 = scalar_select %p155, %s156, %s157
      %p161 = pneg %p155
      %p162 = scmp.eq.s32.totalorder %s15, 1
      %p163 = por %p161, %p162
      %p164 = scmp.ne.s32.totalorder %s156, %s159
      %p165 = scmp.eq.s32.totalorder %s15, 0
      %p166 = por %p164, %p165
      %p167 = scmp.ne.s32.totalorder %s156, %s159
      %p168 = scmp.eq.s32.totalorder %s20, 1
      %p169 = por %p167, %p168
      %p170 = scmp.ne.s32.totalorder %s159, %s160
      %p171 = scmp.eq.s32.totalorder %s20, 0
      %p172 = por %p170, %p171
      %p173 = scmp.ne.s32.totalorder %s159, %s160
      %p174 = scmp.eq.s32.totalorder %s21, 1
      %p175 = por %p173, %p174
      %p177 = scmp.ne.s32.totalorder %s160, %s176
      %p178 = scmp.eq.s32.totalorder %s21, 0
      %p179 = por %p177, %p178
      %p180 = scmp.le.s32.totalorder 1, %s15
      %p181 = scmp.lt.s32.totalorder %s15, 3
      %p182 = pnand %p180, %p181
      %p183 = pneg %p182
      // Predicated region
      $region9: #{tpu_custom_call.1} parent=5 // pred_check
        _
      $region10: #{tpu_custom_call.1} parent=5 // pred_check_branch
        %185 = sbr.rel (%p182) target = $region12
      $region11: #{tpu_custom_call.1} parent=5 // pred_region
        %s186 = ssub.s32 %s15, 1
        // Predicated region
        $region13: #{tpu_custom_call.1} parent=11 // pred_check
          %p187 = pneg %p62
        $region14: #{tpu_custom_call.1} parent=11 // pred_check_branch
          %189 = sbr.rel (%p187) target = $region16
        $region15: #{tpu_custom_call.1} parent=11 // pred_region
          _
        $region16: #{tpu_custom_call.1} parent=11 // pred_fallthru
          _
        // Predicated region
        $region17: #{tpu_custom_call.1} parent=11 // pred_check
          %p190 = pneg %p83
        $region18: #{tpu_custom_call.1} parent=11 // pred_check_branch
          %192 = sbr.rel (%p190) target = $region20
        $region19: #{tpu_custom_call.1} parent=11 // pred_region
          _
        $region20: #{tpu_custom_call.1} parent=11 // pred_fallthru
          _
        // Predicated region
        $region21: #{tpu_custom_call.1} parent=11 // pred_check
          %p193 = pneg %p104
        $region22: #{tpu_custom_call.1} parent=11 // pred_check_branch
          %195 = sbr.rel (%p193) target = $region24
        $region23: #{tpu_custom_call.1} parent=11 // pred_region
          _
        $region24: #{tpu_custom_call.1} parent=11 // pred_fallthru
          _
        // Predicated region
        $region25: #{tpu_custom_call.1} parent=11 // pred_check
          %p196 = pneg %p125
        $region26: #{tpu_custom_call.1} parent=11 // pred_check_branch
          %198 = sbr.rel (%p196) target = $region28
        $region27: #{tpu_custom_call.1} parent=11 // pred_region
          _
        $region28: #{tpu_custom_call.1} parent=11 // pred_fallthru
          _
        // Predicated region
        $region29: #{tpu_custom_call.1} parent=11 // pred_check
          %p199 = pneg %p146
        $region30: #{tpu_custom_call.1} parent=11 // pred_check_branch
          %201 = sbr.rel (%p199) target = $region32
        $region31: #{tpu_custom_call.1} parent=11 // pred_region
          _
        $region32: #{tpu_custom_call.1} parent=11 // pred_fallthru
          _
      $region12: #{tpu_custom_call.1} parent=5 // pred_fallthru
        _
      %p202 = scmp.lt.s32.totalorder %s15, 2
      // Predicated region
      $region33: #{tpu_custom_call.1} parent=5 // pred_check
        %p203 = pneg %p202
      $region34: #{tpu_custom_call.1} parent=5 // pred_check_branch
        %205 = sbr.rel (%p203) target = $region36
      $region35: #{tpu_custom_call.1} parent=5 // pred_region
        // Predicated region
        $region37: #{tpu_custom_call.1} parent=35 // pred_check
          %p206 = pneg %p35
        $region38: #{tpu_custom_call.1} parent=35 // pred_check_branch
          %208 = sbr.rel (%p206) target = $region40
        $region39: #{tpu_custom_call.1} parent=35 // pred_region
          %p209 = scmp.lt.s32.totalorder %s15, 1
          %s210 = scalar_select %p209, %s15, 1
          %s211 = smul.addr %s210, 2
          %s212 = smul.addr %s211, 4
          %s213 = scalar_lea.vmem %s0, %s212
        $region40: #{tpu_custom_call.1} parent=35 // pred_fallthru
          _
      $region36: #{tpu_custom_call.1} parent=5 // pred_fallthru
        _
      %p214 = scmp.le.s32.totalorder 1, %s15
      %p215 = scmp.lt.s32.totalorder %s15, 3
      %p216 = pnand %p214, %p215
      %p217 = pneg %p216
      // Predicated region
      $region41: #{tpu_custom_call.1} parent=5 // pred_check
        _
      $region42: #{tpu_custom_call.1} parent=5 // pred_check_branch
        %219 = sbr.rel (%p216) target = $region44
      $region43: #{tpu_custom_call.1} parent=5 // pred_region
        %s220 = ssub.s32 %s15, 1
        %p221 = scmp.lt.s32.totalorder %s20, 1
        %s222 = scalar_select %p221, %s20, 1
        %s223 = smul.addr %s222, 2
        %s224 = smul.addr %s223, 4
        %s225 = scalar_lea.vmem %s0, %s224
        %p226 = pneg %p41
        %p227 = pneg %p38
        %p228 = pneg %p62
        %p229 = pneg %p59
        %p230 = pneg %p83
        %p231 = pneg %p80
        %p232 = pneg %p104
        %p233 = pneg %p101
        %p234 = pneg %p125
        %p235 = pneg %p122
        %p236 = pneg %p146
        %p237 = pneg %p143
        %p238 = pneg %p172
        %p239 = pneg %p169
        %s240 = sand.u32 %s159, 1
        %s241 = scalar_lea.sflag [#allocation4], %s240
        %s242 = sand.u32 %s159, 1
        %s243 = smul.addr %s242, 16
        %s244 = scalar_lea.vmem [#allocation3], %s243
        %p245 = scmp.lt.s32.totalorder %s20, 1
        %s246 = scalar_select %p245, %s20, 1
        %s247 = smul.addr %s246, 2
        %s248 = smul.addr %s247, 4
        %s249 = scalar_lea.vmem %s0, %s248
        %v251 = vld [vmem:[%s249] sm:$0xff]
        %v252 = vld [vmem:[%s1] sm:$0xf]
        %254 = vset.pattern.permute.xlu0 0
        %255 = vperm.xlu0 %254, %v252
        %v256 = vpop.permute.xlu0 %255
        %v258 = vunpack.c.l.s4 839922192
        %v259 = vunpack.c.0.s8 %v258
        %v260 = vlaneseq
        %v261 = vshrl.u32 %v260, 7
        %v262 = vsub.s32 %v259, %v261
        %v263 = vrot.slane %v256, %v262
        %v265 = vmul.f32 %v251, %v263
        %v266 = vld [vmem:[%s2] sm:$0xf]
        %268 = vset.pattern.permute.xlu0 0
        %269 = vperm.xlu0 %268, %v266
        %v270 = vpop.permute.xlu0 %269
        %v272 = vunpack.c.l.s4 839922192
        %v273 = vunpack.c.0.s8 %v272
        %v274 = vlaneseq
        %v275 = vshrl.u32 %v274, 7
        %v276 = vsub.s32 %v273, %v275
        %v277 = vrot.slane %v270, %v276
        %v279 = vadd.f32 %v265, %v277
        %v280 = vmax.f32 %v279, 0.0
        %v281 = vld [vmem:[%s3] sm:$0xf]
        %v282 = vld [vmem:[%s3 + $0x4] sm:$0xf]
        %v283 = vld [vmem:[%s3 + $0x8] sm:$0xf]
        %v284 = vld [vmem:[%s3 + $0xc] sm:$0xf]
        %v286 = vcombine.high %v280, %v280
        %v288 = vpack.c.bf16 %v280, %v280
        %v289 = vpack.c.bf16 %v286, %v286
        %v290 = vld [vmem:[%s4] sm:$0xff]
        %v291 = vld [vmem:[%s4 + $0x8] sm:$0xff]
        %v292 = vld [vmem:[%s4 + $0x10] sm:$0xff]
        %v293 = vld [vmem:[%s4 + $0x18] sm:$0xff]
        %295 = vset.pattern.permute.xlu0 0
        %296 = vperm.xlu0 %295, %v290
        %v297 = vpop.permute.xlu0 %296
        %300 = vset.pattern.permute.xlu0 0
        %301 = vperm.xlu0 %300, %v291
        %v302 = vpop.permute.xlu0 %301
        %305 = vset.pattern.permute.xlu0 0
        %306 = vperm.xlu0 %305, %v292
        %v307 = vpop.permute.xlu0 %306
        %310 = vset.pattern.permute.xlu0 0
        %311 = vperm.xlu0 %310, %v293
        %v312 = vpop.permute.xlu0 %311
        %v318 = vunpack.c.l.b16 %v281
        %v319 = vunpack.c.l.b16 %v282
        %v320 = vunpack.c.l.b16 %v283
        %v321 = vunpack.c.l.b16 %v284
        %v322 = vpack.c.b16 %v319, %v318
        %v323 = vpack.c.b16 %v321, %v320
        %vm324 = vcmask 31744
        %v326 = vsel %vm324, %v322, 0
        %v329 = vsel %vm324, %v323, 0
        %vm331 = vcmask 1041408
        %v333 = vsel %vm331, %v288, 0
        %v336 = vsel %vm331, %v289, 0
        %338 = vmatprep.subr.bf16.mxu0 %v336
        %339 = vmatpush1.bf16.msra.mxu0 %v333
        %340 = vmatprep.subr.bf16.mxu0 0
        %341 = vmatpush1.bf16.msra.mxu0 0
        %342 = vmatprep.subr.bf16.mxu0 0
        %343 = vmatpush1.bf16.msra.mxu0 0
        %344 = vmatprep.subr.bf16.mxu0 0
        %345 = vmatpush1.bf16.msra.mxu0 0
        %346 = vmatprep.subr.bf16.mxu0 0
        %347 = vmatpush1.bf16.msra.mxu0 0
        %348 = vmatprep.subr.bf16.mxu0 0
        %349 = vmatpush1.bf16.msra.mxu0 0
        %350 = vmatprep.subr.bf16.mxu0 0
        %351 = vmatpush1.bf16.msra.mxu0 0
        %352 = vmatprep.subr.bf16.mxu0 0
        %353 = vmatpush1.bf16.msra.mxu0 0
        %354 = vmatprep.subr.bf16.mxu0 0
        %355 = vmatpush1.bf16.msra.mxu0 0
        %356 = vmatprep.subr.bf16.mxu0 0
        %357 = vmatpush1.bf16.msra.mxu0 0
        %358 = vmatprep.subr.bf16.mxu0 0
        %359 = vmatpush1.bf16.msra.mxu0 0
        %360 = vmatprep.subr.bf16.mxu0 0
        %361 = vmatpush1.bf16.msra.mxu0 0
        %362 = vmatprep.subr.bf16.mxu0 0
        %363 = vmatpush1.bf16.msra.mxu0 0
        %364 = vmatprep.subr.bf16.mxu0 0
        %365 = vmatpush1.bf16.msra.mxu0 0
        %366 = vmatprep.subr.bf16.mxu0 0
        %367 = vmatpush1.bf16.msra.mxu0 0
        %368 = vmatprep.subr.bf16.mxu0 0
        %369 = vmatpush1.bf16.msra.mxu0 0
        %370 = vmatprep.mubr.bf16.mxu0 0
        %371 = vmatmul.mubr.bf16.gmra.mrb[0].mxu0 %v326
        %v372 = vpop.f32.mrb[0].mxu0
        %v373 = vadd.f32 %v297, %v372
        %v374 = vpop.f32.mrb[0].mxu0
        %v375 = vadd.f32 %v297, %v374
        %v376 = vpop.f32.mrb[0].mxu0
        %v377 = vadd.f32 %v302, %v376
        %v378 = vpop.f32.mrb[0].mxu0
        %v379 = vadd.f32 %v302, %v378
        %380 = vmatprep.mubr.bf16.mxu0 0
        %381 = vmatmul.mubr.bf16.gmra.mrb[0].mxu0 %v329
        %v382 = vpop.f32.mrb[0].mxu0
        %v383 = vadd.f32 %v307, %v382
        %v384 = vpop.f32.mrb[0].mxu0
        %v385 = vadd.f32 %v307, %v384
        %v386 = vpop.f32.mrb[0].mxu0
        %v387 = vadd.f32 %v312, %v386
        %v388 = vpop.f32.mrb[0].mxu0
        %v389 = vadd.f32 %v312, %v388
        %390 = vdwg.mxu0
        %v391 = vmax.f32 %v373, 0.0
        %v392 = vmax.f32 %v375, 0.0
        %v393 = vmax.f32 %v377, 0.0
        %v394 = vmax.f32 %v379, 0.0
        %v395 = vmax.f32 %v383, 0.0
        %v396 = vmax.f32 %v385, 0.0
        %v397 = vmax.f32 %v387, 0.0
        %v398 = vmax.f32 %v389, 0.0
        %v399 = vpack.c.bf16 %v393, %v391
        %v400 = vpack.c.bf16 %v394, %v392
        %v401 = vpack.c.bf16 %v397, %v395
        %v402 = vpack.c.bf16 %v398, %v396
        %403 = vst [vmem:[#allocation2] sm:$0xff] %v399
        %404 = vst [vmem:[#allocation2 + $0x8] sm:$0xff] %v400
        %405 = vst [vmem:[#allocation2 + $0x18] sm:$0xff] %v401
        %406 = vst [vmem:[#allocation2 + $0x20] sm:$0xff] %v402
        %vm407 = vcmask 130048
        %408 = vst.msk [vmem:[#allocation2 + $0x10] sm:$0xff] %vm407, 0
        %409 = vst.msk [vmem:[#allocation2 + $0x28] sm:$0xff] %vm407, 0
        %v410 = vld [vmem:[#allocation2] sm:$0xff]
        %v411 = vld [vmem:[#allocation2 + $0x8] sm:$0xff]
        %v412 = vld [vmem:[#allocation2 + $0x18] sm:$0xff]
        %v413 = vld [vmem:[#allocation2 + $0x20] sm:$0xff]
        %418 = vrot.lane.b32.xlu0 %v410, 112
        %v419 = vpop.permute.xlu0 %418
        %420 = vrot.lane.b32.xlu0 %v411, 112
        %v421 = vpop.permute.xlu0 %420
        %422 = vrot.lane.b32.xlu0 %v412, 112
        %v423 = vpop.permute.xlu0 %422
        %424 = vrot.lane.b32.xlu0 %v413, 112
        %v425 = vpop.permute.xlu0 %424
        %vm426 = vcmask 916480
        %v427 = vsel %vm426, %v419, %v421
        %v428 = vsel %vm426, %v423, %v425
        %433 = vrot.lane.b32.xlu0 %v410, 96
        %v434 = vpop.permute.xlu0 %433
        %435 = vrot.lane.b32.xlu0 %v411, 96
        %v436 = vpop.permute.xlu0 %435
        %437 = vrot.lane.b32.xlu0 %v412, 96
        %v438 = vpop.permute.xlu0 %437
        %439 = vrot.lane.b32.xlu0 %v413, 96
        %v440 = vpop.permute.xlu0 %439
        %vm441 = vcmask 785408
        %v442 = vsel %vm441, %v434, %v436
        %v443 = vsel %vm441, %v438, %v440
        %v448 = vld [vmem:[%s5] sm:$0xf]
        %v449 = vld [vmem:[#allocation2 + $0x10] sm:$0xff]
        %v450 = vld [vmem:[#allocation2 + $0x28] sm:$0xff]
        %453 = vrot.lane.b32.xlu0 %v449, 96
        %v454 = vpop.permute.xlu0 %453
        %455 = vrot.lane.b32.xlu0 %v450, 96
        %v456 = vpop.permute.xlu0 %455
        %v457 = vsel %vm441, %v436, %v454
        %v458 = vsel %vm441, %v440, %v456
        %s459 = scalar_lea.vmem %s5, 4
        %v460 = vld [vmem:[%s459] sm:$0xf]
        %461 = vrot.lane.b32.xlu0 %v410, 127
        %v462 = vpop.permute.xlu0 %461
        %463 = vrot.lane.b32.xlu0 %v411, 127
        %v464 = vpop.permute.xlu0 %463
        %465 = vrot.lane.b32.xlu0 %v412, 127
        %v466 = vpop.permute.xlu0 %465
        %467 = vrot.lane.b32.xlu0 %v413, 127
        %v468 = vpop.permute.xlu0 %467
        %469 = vrot.lane.b32.xlu0 %v427, 127
        %v470 = vpop.permute.xlu0 %469
        %471 = vrot.lane.b32.xlu0 %v421, 127
        %v472 = vpop.permute.xlu0 %471
        %473 = vrot.lane.b32.xlu0 %v428, 127
        %v474 = vpop.permute.xlu0 %473
        %475 = vrot.lane.b32.xlu0 %v425, 127
        %v476 = vpop.permute.xlu0 %475
        %477 = vrot.lane.b32.xlu0 %v442, 127
        %v478 = vpop.permute.xlu0 %477
        %479 = vrot.lane.b32.xlu0 %v457, 127
        %v480 = vpop.permute.xlu0 %479
        %481 = vrot.lane.b32.xlu0 %v443, 127
        %v482 = vpop.permute.xlu0 %481
        %483 = vrot.lane.b32.xlu0 %v458, 127
        %v484 = vpop.permute.xlu0 %483
        %vm485 = vcmask 1039360
        %v486 = vsel %vm485, %v462, %v464
        %v487 = vsel %vm485, %v466, %v468
        %v488 = vsel %vm485, %v470, %v472
        %v489 = vsel %vm485, %v474, %v476
        %v490 = vsel %vm485, %v478, %v480
        %v491 = vsel %vm485, %v482, %v484
        %vm504 = vcmask 785408
        %v506 = vsel %vm504, %v460, 0
        %508 = vmatprep.subr.bf16.mxu0 %v464
        %509 = vmatpush1.bf16.msra.mxu0 %v486
        %510 = vmatprep.subr.bf16.mxu0 %v468
        %511 = vmatpush1.bf16.msra.mxu0 %v487
        %512 = vmatprep.subr.bf16.mxu0 %v472
        %513 = vmatpush1.bf16.msra.mxu0 %v488
        %514 = vmatprep.subr.bf16.mxu0 %v476
        %515 = vmatpush1.bf16.msra.mxu0 %v489
        %516 = vmatprep.subr.bf16.mxu0 %v480
        %517 = vmatpush1.bf16.msra.mxu0 %v490
        %518 = vmatprep.subr.bf16.mxu0 %v484
        %519 = vmatpush1.bf16.msra.mxu0 %v491
        %520 = vmatprep.subr.bf16.mxu0 0
        %521 = vmatpush1.bf16.msra.mxu0 0
        %522 = vmatprep.subr.bf16.mxu0 0
        %523 = vmatpush1.bf16.msra.mxu0 0
        %524 = vmatprep.subr.bf16.mxu0 0
        %525 = vmatpush1.bf16.msra.mxu0 0
        %526 = vmatprep.subr.bf16.mxu0 0
        %527 = vmatpush1.bf16.msra.mxu0 0
        %528 = vmatprep.subr.bf16.mxu0 0
        %529 = vmatpush1.bf16.msra.mxu0 0
        %530 = vmatprep.subr.bf16.mxu0 0
        %531 = vmatpush1.bf16.msra.mxu0 0
        %532 = vmatprep.subr.bf16.mxu0 0
        %533 = vmatpush1.bf16.msra.mxu0 0
        %534 = vmatprep.subr.bf16.mxu0 0
        %535 = vmatpush1.bf16.msra.mxu0 0
        %536 = vmatprep.subr.bf16.mxu0 0
        %537 = vmatpush1.bf16.msra.mxu0 0
        %538 = vmatprep.subr.bf16.mxu0 0
        %539 = vmatpush1.bf16.msra.mxu0 0
        %540 = vmatprep.mubr.bf16.mxu0 0
        %541 = vmatmul.mubr.bf16.gmra.mrb[0].mxu0 %v506
        %v542 = vpop.f32.mrb[0].mxu0
        %v543 = vadd.f32 0.0, %v542
        %v544 = vpop.f32.mrb[0].mxu0
        %v545 = vadd.f32 0.0, %v544
        %v546 = vpop.f32.mrb[0].mxu0
        %v547 = vpop.f32.mrb[0].mxu0
        %548 = vdwg.mxu0
        %v550 = vsel %vm504, %v448, 0
        %552 = vmatprep.subr.bf16.mxu0 %v411
        %553 = vmatpush1.bf16.msra.mxu0 %v410
        %554 = vmatprep.subr.bf16.mxu0 %v413
        %555 = vmatpush1.bf16.msra.mxu0 %v412
        %556 = vmatprep.subr.bf16.mxu0 %v421
        %557 = vmatpush1.bf16.msra.mxu0 %v427
        %558 = vmatprep.subr.bf16.mxu0 %v425
        %559 = vmatpush1.bf16.msra.mxu0 %v428
        %560 = vmatprep.subr.bf16.mxu0 %v436
        %561 = vmatpush1.bf16.msra.mxu0 %v442
        %562 = vmatprep.subr.bf16.mxu0 %v440
        %563 = vmatpush1.bf16.msra.mxu0 %v443
        %564 = vmatprep.subr.bf16.mxu0 0
        %565 = vmatpush1.bf16.msra.mxu0 0
        %566 = vmatprep.subr.bf16.mxu0 0
        %567 = vmatpush1.bf16.msra.mxu0 0
        %568 = vmatprep.subr.bf16.mxu0 0
        %569 = vmatpush1.bf16.msra.mxu0 0
        %570 = vmatprep.subr.bf16.mxu0 0
        %571 = vmatpush1.bf16.msra.mxu0 0
        %572 = vmatprep.subr.bf16.mxu0 0
        %573 = vmatpush1.bf16.msra.mxu0 0
        %574 = vmatprep.subr.bf16.mxu0 0
        %575 = vmatpush1.bf16.msra.mxu0 0
        %576 = vmatprep.subr.bf16.mxu0 0
        %577 = vmatpush1.bf16.msra.mxu0 0
        %578 = vmatprep.subr.bf16.mxu0 0
        %579 = vmatpush1.bf16.msra.mxu0 0
        %580 = vmatprep.subr.bf16.mxu0 0
        %581 = vmatpush1.bf16.msra.mxu0 0
        %582 = vmatprep.subr.bf16.mxu0 0
        %583 = vmatpush1.bf16.msra.mxu0 0
        %584 = vmatprep.mubr.bf16.mxu0 0
        %585 = vmatmul.mubr.bf16.gmra.mrb[0].mxu0 %v550
        %v586 = vpop.f32.mrb[0].mxu0
        %v587 = vadd.f32 %v543, %v586
        %v588 = vpop.f32.mrb[0].mxu0
        %v589 = vadd.f32 %v545, %v588
        %v590 = vpop.f32.mrb[0].mxu0
        %v591 = vpop.f32.mrb[0].mxu0
        %592 = vdwg.mxu0
        %s593 = scalar_lea.vmem %s5, 8
        %v594 = vld [vmem:[%s593] sm:$0xf]
        %595 = vrot.lane.b32.xlu0 %v410, 126
        %v596 = vpop.permute.xlu0 %595
        %597 = vrot.lane.b32.xlu0 %v411, 126
        %v598 = vpop.permute.xlu0 %597
        %599 = vrot.lane.b32.xlu0 %v412, 126
        %v600 = vpop.permute.xlu0 %599
        %601 = vrot.lane.b32.xlu0 %v413, 126
        %v602 = vpop.permute.xlu0 %601
        %603 = vrot.lane.b32.xlu0 %v427, 126
        %v604 = vpop.permute.xlu0 %603
        %605 = vrot.lane.b32.xlu0 %v421, 126
        %v606 = vpop.permute.xlu0 %605
        %607 = vrot.lane.b32.xlu0 %v428, 126
        %v608 = vpop.permute.xlu0 %607
        %609 = vrot.lane.b32.xlu0 %v425, 126
        %v610 = vpop.permute.xlu0 %609
        %611 = vrot.lane.b32.xlu0 %v442, 126
        %v612 = vpop.permute.xlu0 %611
        %613 = vrot.lane.b32.xlu0 %v457, 126
        %v614 = vpop.permute.xlu0 %613
        %615 = vrot.lane.b32.xlu0 %v443, 126
        %v616 = vpop.permute.xlu0 %615
        %617 = vrot.lane.b32.xlu0 %v458, 126
        %v618 = vpop.permute.xlu0 %617
        %vm619 = vcmask 1031168
        %v620 = vsel %vm619, %v596, %v598
        %v621 = vsel %vm619, %v600, %v602
        %v622 = vsel %vm619, %v604, %v606
        %v623 = vsel %vm619, %v608, %v610
        %v624 = vsel %vm619, %v612, %v614
        %v625 = vsel %vm619, %v616, %v618
        %v639 = vsel %vm504, %v594, 0
        %641 = vmatprep.subr.bf16.mxu0 %v598
        %642 = vmatpush1.bf16.msra.mxu0 %v620
        %643 = vmatprep.subr.bf16.mxu0 %v602
        %644 = vmatpush1.bf16.msra.mxu0 %v621
        %645 = vmatprep.subr.bf16.mxu0 %v606
        %646 = vmatpush1.bf16.msra.mxu0 %v622
        %647 = vmatprep.subr.bf16.mxu0 %v610
        %648 = vmatpush1.bf16.msra.mxu0 %v623
        %649 = vmatprep.subr.bf16.mxu0 %v614
        %650 = vmatpush1.bf16.msra.mxu0 %v624
        %651 = vmatprep.subr.bf16.mxu0 %v618
        %652 = vmatpush1.bf16.msra.mxu0 %v625
        %653 = vmatprep.subr.bf16.mxu0 0
        %654 = vmatpush1.bf16.msra.mxu0 0
        %655 = vmatprep.subr.bf16.mxu0 0
        %656 = vmatpush1.bf16.msra.mxu0 0
        %657 = vmatprep.subr.bf16.mxu0 0
        %658 = vmatpush1.bf16.msra.mxu0 0
        %659 = vmatprep.subr.bf16.mxu0 0
        %660 = vmatpush1.bf16.msra.mxu0 0
        %661 = vmatprep.subr.bf16.mxu0 0
        %662 = vmatpush1.bf16.msra.mxu0 0
        %663 = vmatprep.subr.bf16.mxu0 0
        %664 = vmatpush1.bf16.msra.mxu0 0
        %665 = vmatprep.subr.bf16.mxu0 0
        %666 = vmatpush1.bf16.msra.mxu0 0
        %667 = vmatprep.subr.bf16.mxu0 0
        %668 = vmatpush1.bf16.msra.mxu0 0
        %669 = vmatprep.subr.bf16.mxu0 0
        %670 = vmatpush1.bf16.msra.mxu0 0
        %671 = vmatprep.subr.bf16.mxu0 0
        %672 = vmatpush1.bf16.msra.mxu0 0
        %673 = vmatprep.mubr.bf16.mxu0 0
        %674 = vmatmul.mubr.bf16.gmra.mrb[0].mxu0 %v639
        %v675 = vpop.f32.mrb[0].mxu0
        %v676 = vadd.f32 0.0, %v675
        %v677 = vpop.f32.mrb[0].mxu0
        %v678 = vadd.f32 0.0, %v677
        %v679 = vpop.f32.mrb[0].mxu0
        %v680 = vpop.f32.mrb[0].mxu0
        %681 = vdwg.mxu0
        %v682 = vadd.f32 %v587, %v676
        %v683 = vadd.f32 %v589, %v678
        %684 = vst [vmem:[%s244] sm:$0xff] %v682
        %685 = vst.msk [vmem:[%s244 + $0x8] sm:$0xff] %vm504, %v683
        %s686 = sand.u32 %s159, 1
        %s687 = scalar_lea.sflag [#allocation4], %s686
        %s688 = sand.u32 %s159, 1
        %s689 = smul.addr %s688, 16
        %s690 = scalar_lea.vmem [#allocation3], %s689
        // Predicated region
        $region45: #{tpu_custom_call.1} parent=43 // pred_check
          %p691 = pneg %p169
        $region46: #{tpu_custom_call.1} parent=43 // pred_check_branch
          %693 = sbr.rel (%p691) target = $region48
        $region47: #{tpu_custom_call.1} parent=43 // pred_region
          %s695 = ssub.s32 256, 256
          %696 = vsyncadd %s687, %s695
          %s697 = smul.addr %s20, 2
          %s698 = smul.addr %s697, 128
          %s699 = scalar_lea.hbm %s6, %s698
          %s701 = sshll.u32 %s690, 4
          %s702 = int_to_ptr.vmem [resolvable:$true] %s701
          %704 = dma.vmem_to_hbm [thread:$0]  %s702, 256, %s699, %s687
        $region48: #{tpu_custom_call.1} parent=43 // pred_fallthru
          _
      $region44: #{tpu_custom_call.1} parent=5 // pred_fallthru
        _
      %p705 = scmp.le.s32.totalorder 2, %s15
      // Predicated region
      $region49: #{tpu_custom_call.1} parent=5 // pred_check
        %p706 = pneg %p705
      $region50: #{tpu_custom_call.1} parent=5 // pred_check_branch
        %708 = sbr.rel (%p706) target = $region52
      $region51: #{tpu_custom_call.1} parent=5 // pred_region
        %s709 = ssub.s32 %s15, 2
        // Predicated region
        $region53: #{tpu_custom_call.1} parent=51 // pred_check
          %p710 = pneg %p175
        $region54: #{tpu_custom_call.1} parent=51 // pred_check_branch
          %712 = sbr.rel (%p710) target = $region56
        $region55: #{tpu_custom_call.1} parent=51 // pred_region
          %s713 = sand.u32 %s160, 1
          %s714 = scalar_lea.sflag [#allocation4], %s713
          %s715 = sand.u32 %s160, 1
          %s716 = smul.addr %s715, 16
          %s717 = scalar_lea.vmem [#allocation3], %s716
          %718 = dma.done %s714, 256
        $region56: #{tpu_custom_call.1} parent=51 // pred_fallthru
          _
      $region52: #{tpu_custom_call.1} parent=5 // pred_fallthru
        _
    $region6: #{tpu_custom_call.1} parent=1 // loop_footer
      %s19 = sadd.s32 1, %s15
    $region7: #{tpu_custom_call.1} parent=1 // loop_footer_branch
      %14 = sbr.rel target = $region3
    $region8: #{tpu_custom_call.1} parent=1 // loop_exit
      _
    %719 = vsyncpa [#allocation4], 1
    %s720 = scalar_lea.sflag [#allocation4], 1
    %721 = vsyncpa %s720, 1

</llo_original>
